<compile_context>
chip_gen: v7x
topology: tpu7x:2x2x1
jax: 0.10.0
libtpu: 0.0.40
codegen_flags: <defaults>
</compile_context>

<pallas_src>
import functools

import jax
import jax.numpy as jnp
from jax.experimental import pallas as pl
from jax.experimental.pallas import tpu as pltpu


def _masklm_kernel(x_ref, w1_ref, b1_ref, gamma_ref, beta_ref,
                   w2_ref, b2_ref, o_ref, h_ref):
    """Grid = (row_tiles, vocab_split, vocab_tiles); last axis is 'arbitrary'."""

    # Linear1 + ReLU + LayerNorm: once per (row tile, vocab split), cached in
    # VMEM already cast to W2's dtype so the vocab loop is a pure MXU feed.
    @pl.when(pl.program_id(2) == 0)
    def _():
        x = x_ref[...]
        h = jnp.dot(x, w1_ref[...], preferred_element_type=jnp.float32)
        h = h + b1_ref[...]
        h = jnp.maximum(h, 0.0)
        # LayerNorm over hidden dim (biased variance, eps=1e-5, like PyTorch).
        mean = jnp.mean(h, axis=-1, keepdims=True)
        centered = h - mean
        var = jnp.mean(centered * centered, axis=-1, keepdims=True)
        h = centered * jax.lax.rsqrt(var + 1e-5)
        h = h * gamma_ref[...] + beta_ref[...]
        h_ref[...] = h.astype(h_ref.dtype)

    # Linear2 over the current vocab tile -> lane-dense (multiple-of-128)
    # unmasked output store.
    y = jnp.dot(h_ref[...], w2_ref[...], preferred_element_type=jnp.float32)
    o_ref[...] = (y + b2_ref[...]).astype(o_ref.dtype)


def prepare_params(params, *, tile_n=2048, weight_dtype=jnp.bfloat16):
    """One-time weight prep: cast W2, pad the vocab dim to a tile_n multiple.

    Doing this here (instead of inside the jitted forward) avoids re-padding /
    re-casting the big W2 on every call.
    TODO(synk): optional int8 (v5e/v6e) or fp8 (v7x) W2 storage with per-column
                scales folded into the Linear2 epilogue.
    """
    W2 = params["W2"]
    H, V = W2.shape

    tile_n = max(128, (int(tile_n) // 128) * 128)
    tile_n = min(tile_n, pl.cdiv(V, 128) * 128)
    V_pad = pl.cdiv(V, tile_n) * tile_n

    b2 = params["b2"].reshape(1, V).astype(jnp.float32)
    if V_pad != V:
        W2 = jnp.pad(W2, ((0, 0), (0, V_pad - V)))
        b2 = jnp.pad(b2, ((0, 0), (0, V_pad - V)))

    prepared = {
        # W1 stays f32: it is tiny (H_in x H), keeps the LayerNorm input exact,
        # and the HBM-bound operand is W2.
        "W1": params["W1"].astype(jnp.float32),
        "b1": params["b1"].reshape(1, -1).astype(jnp.float32),
        "gamma": params["gamma"].reshape(1, -1).astype(jnp.float32),
        "beta": params["beta"].reshape(1, -1).astype(jnp.float32),
        "W2": W2.astype(weight_dtype),
        "b2": b2,
    }
    meta = {"vocab_size": int(V), "tile_n": int(tile_n)}
    return prepared, meta


@functools.partial(jax.jit, static_argnames=("vocab_size", "tile_n", "tile_m"))
def masklm_forward(X, pred_positions, prepared, *, vocab_size, tile_n,
                   tile_m=512):
    """Pallas implementation of MaskLM.forward.

    X:              (batch, seq_len, num_inputs)  float32
    pred_positions: (batch, num_pred)             int32
    returns:        (batch, num_pred, vocab_size) float32
    """
    W1 = prepared["W1"]
    b1 = prepared["b1"]
    gamma = prepared["gamma"]
    beta = prepared["beta"]
    W2 = prepared["W2"]
    b2 = prepared["b2"]

    B, S, H_in = X.shape
    P = pred_positions.shape[1]
    H = W1.shape[1]
    V_pad = W2.shape[1]
    V = vocab_size

    # Masked-position gather (same semantics as torch advanced indexing).
    # TODO(synk): fuse this gather into the kernel via scalar-prefetch-driven
    #             row DMA so masked_X never round-trips through HBM.
    batch_idx = jnp.repeat(jnp.arange(B, dtype=jnp.int32), P)
    flat_pos = pred_positions.reshape(-1).astype(jnp.int32)
    masked_X = X[batch_idx, flat_pos].astype(jnp.float32)        # (B*P, H_in)

    T = B * P
    # Row tile: a multiple of 256 fills the 256x256 MXU on v6e/v7x and raises
    # the W2-stream arithmetic intensity; clamp (multiple of 8) for toy T.
    tile_m = max(8, min(tile_m, pl.cdiv(T, 8) * 8))
    T_pad = pl.cdiv(T, tile_m) * tile_m
    if T_pad != T:
        masked_X = jnp.pad(masked_X, ((0, T_pad - T), (0, 0)))

    row_tiles = T_pad // tile_m
    vocab_tiles = V_pad // tile_n
    # v7x has 2 TensorCores; if there is only one row tile, split the vocab
    # range across a second "parallel" grid axis so both cores get work.
    n_split = 2 if (row_tiles == 1 and vocab_tiles >= 2
                    and vocab_tiles % 2 == 0) else 1
    nj = vocab_tiles // n_split
    grid = (row_tiles, n_split, nj)

    # VMEM budget: double-buffered pipeline tiles + hidden scratch, with
    # headroom, capped at this generation's physical VMEM.
    w2_bytes = jnp.dtype(W2.dtype).itemsize
    est = (2 * tile_m * H_in * 4                 # masked_X tiles
           + 2 * H_in * H * 4                    # W1
           + 2 * 3 * H * 4                       # b1, gamma, beta
           + 2 * H * tile_n * w2_bytes           # W2 tiles
           + 2 * tile_n * 4                      # b2 tiles
           + 2 * tile_m * tile_n * 4             # output tiles
           + tile_m * H * w2_bytes)              # hidden scratch
    try:
        vmem_cap = int(getattr(pltpu.get_tpu_info(), "vmem_capacity_bytes",
                               64 << 20))
    except Exception:  # pragma: no cover - defensive fallback
        vmem_cap = 64 << 20
    vmem_limit = int(min(max(est + est // 2 + (4 << 20), 32 << 20), vmem_cap))

    out = pl.pallas_call(
        _masklm_kernel,
        out_shape=jax.ShapeDtypeStruct((T_pad, V_pad), jnp.float32),
        grid_spec=pltpu.PrefetchScalarGridSpec(
            num_scalar_prefetch=0,
            grid=grid,
            in_specs=[
                pl.BlockSpec((tile_m, H_in), lambda i, s, j: (i, 0)),      # rows
                pl.BlockSpec((H_in, H),      lambda i, s, j: (0, 0)),      # W1
                pl.BlockSpec((1, H),         lambda i, s, j: (0, 0)),      # b1
                pl.BlockSpec((1, H),         lambda i, s, j: (0, 0)),      # gamma
                pl.BlockSpec((1, H),         lambda i, s, j: (0, 0)),      # beta
                pl.BlockSpec((H, tile_n),    lambda i, s, j: (0, s * nj + j)),  # W2
                pl.BlockSpec((1, tile_n),    lambda i, s, j: (0, s * nj + j)),  # b2
            ],
            out_specs=pl.BlockSpec((tile_m, tile_n),
                                   lambda i, s, j: (i, s * nj + j)),
            scratch_shapes=[pltpu.VMEM((tile_m, H), W2.dtype)],
        ),
        compiler_params=pltpu.CompilerParams(
            dimension_semantics=("parallel", "parallel", "arbitrary"),
            vmem_limit_bytes=vmem_limit),
    )(masked_X, W1, b1, gamma, beta, W2, b2)

    return out[:T, :V].reshape(B, P, V)


def init_params(key, num_inputs, num_hiddens, vocab_size):
    k1, k2, k3, k4 = jax.random.split(key, 4)
    scale1 = 1.0 / jnp.sqrt(num_inputs)
    scale2 = 1.0 / jnp.sqrt(num_hiddens)
    return {
        "W1": jax.random.normal(k1, (num_inputs, num_hiddens), jnp.float32) * scale1,
        "b1": jax.random.normal(k2, (1, num_hiddens), jnp.float32) * 0.02,
        "gamma": jnp.ones((1, num_hiddens), jnp.float32),
        "beta": jnp.zeros((1, num_hiddens), jnp.float32),
        "W2": jax.random.normal(k3, (num_hiddens, vocab_size), jnp.float32) * scale2,
        "b2": jax.random.normal(k4, (1, vocab_size), jnp.float32) * 0.02,
    }


def _reference_forward(X, pred_positions, params, weight_dtype=jnp.bfloat16):
    """Plain-JAX reference mirroring the PyTorch module (bf16-W2 semantics)."""
    B, S, H_in = X.shape
    P = pred_positions.shape[1]
    batch_idx = jnp.repeat(jnp.arange(B), P)
    masked_X = X[batch_idx, pred_positions.reshape(-1)]
    h = masked_X @ params["W1"] + params["b1"]
    h = jnp.maximum(h, 0.0)
    mean = jnp.mean(h, axis=-1, keepdims=True)
    var = jnp.mean((h - mean) ** 2, axis=-1, keepdims=True)
    h = (h - mean) * jax.lax.rsqrt(var + 1e-5)
    h = h * params["gamma"] + params["beta"]
    h = h.astype(weight_dtype)
    logits = jnp.dot(h, params["W2"].astype(weight_dtype),
                     preferred_element_type=jnp.float32) + params["b2"]
    return logits.reshape(B, P, -1)


if __name__ == "__main__":
    # Small shapes consistent with the module: vocab=64, hidden=32, inputs=32.
    batch, seq_len = 2, 16
    num_inputs, num_hiddens, vocab_size = 32, 32, 64
    num_pred = 4

    key = jax.random.PRNGKey(0)
    kx, kp, kw = jax.random.split(key, 3)

    X = jax.random.normal(kx, (batch, seq_len, num_inputs), jnp.float32)
    pred_positions = jax.random.randint(
        kp, (batch, num_pred), 0, seq_len, dtype=jnp.int32)
    params = init_params(kw, num_inputs, num_hiddens, vocab_size)

    # One-time weight prep (cast W2 -> bf16, pad vocab to tile_n multiple).
    prepared, meta = prepare_params(params, tile_n=2048,
                                    weight_dtype=jnp.bfloat16)

    out = masklm_forward(X, pred_positions, prepared,
                         vocab_size=meta["vocab_size"], tile_n=meta["tile_n"])
    out = jax.block_until_ready(out)

    ref = _reference_forward(X, pred_positions, params,
                             weight_dtype=jnp.bfloat16)
    assert out.shape == (batch, num_pred, vocab_size)
    assert jnp.allclose(out, ref, atol=2e-2, rtol=2e-2), "mismatch vs reference"

    print("KERNEL_OK")
</pallas_src>

<mosaic_0001>
module attributes {stable_mosaic.version = 11 : i64} {
  func.func @_masklm_kernel(%arg0: i32, %arg1: i32, %arg2: i32, %arg3: memref<8x32xf32, #tpu.memory_space<vmem>>, %arg4: memref<32x32xf32, #tpu.memory_space<vmem>>, %arg5: memref<1x32xf32, #tpu.memory_space<vmem>>, %arg6: memref<1x32xf32, #tpu.memory_space<vmem>>, %arg7: memref<1x32xf32, #tpu.memory_space<vmem>>, %arg8: memref<32x128xbf16, #tpu.memory_space<vmem>>, %arg9: memref<1x128xf32, #tpu.memory_space<vmem>>, %arg10: memref<8x128xf32, #tpu.memory_space<vmem>>, %arg11: memref<8x32xbf16, #tpu.memory_space<vmem>>) attributes {dimension_semantics = [#tpu.dimension_semantics<parallel>, #tpu.dimension_semantics<parallel>, #tpu.dimension_semantics<arbitrary>], iteration_bounds = array<i64: 1, 1, 1>, scalar_prefetch = 0 : i64, scratch_operands = 1 : i64, tpu.core_type = #tpu.core_type<tc>, window_params = [{transform_indices = @transform_0, window_bounds = array<i64: 8, 32>}, {pipeline_mode = #tpu.pipeline_mode<synchronous>, transform_indices = @transform_1, window_bounds = array<i64: 32, 32>}, {pipeline_mode = #tpu.pipeline_mode<synchronous>, transform_indices = @transform_2, window_bounds = array<i64: 1, 32>}, {pipeline_mode = #tpu.pipeline_mode<synchronous>, transform_indices = @transform_3, window_bounds = array<i64: 1, 32>}, {pipeline_mode = #tpu.pipeline_mode<synchronous>, transform_indices = @transform_4, window_bounds = array<i64: 1, 32>}, {transform_indices = @transform_5, window_bounds = array<i64: 32, 128>}, {transform_indices = @transform_6, window_bounds = array<i64: 1, 128>}, {transform_indices = @transform_7, window_bounds = array<i64: 8, 128>}]} {
    %c0_i32 = arith.constant 0 : i32
    %0 = arith.cmpi eq, %arg2, %c0_i32 : i32
    %1 = arith.extui %0 : i1 to i32
    %c0_i32_0 = arith.constant 0 : i32
    %2 = arith.cmpi ne, %1, %c0_i32_0 : i32
    scf.if %2 {
      %c0_8 = arith.constant 0 : index
      %c0_9 = arith.constant 0 : index
      %10 = vector.load %arg3[%c0_8, %c0_9] : memref<8x32xf32, #tpu.memory_space<vmem>>, vector<8x32xf32>
      %c0_10 = arith.constant 0 : index
      %c0_11 = arith.constant 0 : index
      %11 = vector.load %arg4[%c0_10, %c0_11] : memref<32x32xf32, #tpu.memory_space<vmem>>, vector<32x32xf32>
      %cst_12 = arith.constant dense<0.000000e+00> : vector<8x32xf32>
      %12 = tpu.matmul %10, %11, %cst_12 {dimension_numbers = #tpu.dot_dimension_numbers<[1], [0], [0], [1], [0, 0, 1, 1], [], []>} : vector<8x32xf32>, vector<32x32xf32>, vector<8x32xf32> -> vector<8x32xf32>
      %c0_13 = arith.constant 0 : index
      %c0_14 = arith.constant 0 : index
      %13 = vector.load %arg5[%c0_13, %c0_14] : memref<1x32xf32, #tpu.memory_space<vmem>>, vector<1x32xf32>
      %14 = vector.broadcast %13 : vector<1x32xf32> to vector<8x32xf32>
      %15 = arith.addf %12, %14 : vector<8x32xf32>
      %cst_15 = arith.constant 0.000000e+00 : f32
      %16 = vector.broadcast %cst_15 : f32 to vector<8x32xf32>
      %17 = arith.maximumf %15, %16 : vector<8x32xf32>
      %cst_16 = arith.constant dense<0.000000e+00> : vector<8xf32>
      %18 = vector.multi_reduction <add>, %17, %cst_16 [1] : vector<8x32xf32> to vector<8xf32>
      %19 = vector.shape_cast %18 : vector<8xf32> to vector<8x1xf32>
      %cst_17 = arith.constant 3.200000e+01 : f32
      %20 = vector.broadcast %cst_17 : f32 to vector<8x1xf32>
      %21 = arith.divf %19, %20 : vector<8x1xf32>
      %22 = vector.broadcast %21 : vector<8x1xf32> to vector<8x32xf32>
      %23 = arith.subf %17, %22 : vector<8x32xf32>
      %24 = arith.mulf %23, %23 : vector<8x32xf32>
      %cst_18 = arith.constant dense<0.000000e+00> : vector<8xf32>
      %25 = vector.multi_reduction <add>, %24, %cst_18 [1] : vector<8x32xf32> to vector<8xf32>
      %26 = vector.shape_cast %25 : vector<8xf32> to vector<8x1xf32>
      %cst_19 = arith.constant 3.200000e+01 : f32
      %27 = vector.broadcast %cst_19 : f32 to vector<8x1xf32>
      %28 = arith.divf %26, %27 : vector<8x1xf32>
      %cst_20 = arith.constant 9.99999974E-6 : f32
      %29 = vector.broadcast %cst_20 : f32 to vector<8x1xf32>
      %30 = arith.addf %28, %29 : vector<8x1xf32>
      %31 = math.rsqrt %30 : vector<8x1xf32>
      %32 = vector.broadcast %31 : vector<8x1xf32> to vector<8x32xf32>
      %33 = arith.mulf %23, %32 : vector<8x32xf32>
      %c0_21 = arith.constant 0 : index
      %c0_22 = arith.constant 0 : index
      %34 = vector.load %arg6[%c0_21, %c0_22] : memref<1x32xf32, #tpu.memory_space<vmem>>, vector<1x32xf32>
      %35 = vector.broadcast %34 : vector<1x32xf32> to vector<8x32xf32>
      %36 = arith.mulf %33, %35 : vector<8x32xf32>
      %c0_23 = arith.constant 0 : index
      %c0_24 = arith.constant 0 : index
      %37 = vector.load %arg7[%c0_23, %c0_24] : memref<1x32xf32, #tpu.memory_space<vmem>>, vector<1x32xf32>
      %38 = vector.broadcast %37 : vector<1x32xf32> to vector<8x32xf32>
      %39 = arith.addf %36, %38 : vector<8x32xf32>
      %40 = arith.truncf %39 : vector<8x32xf32> to vector<8x32xbf16>
      %c0_25 = arith.constant 0 : index
      %c0_26 = arith.constant 0 : index
      %41 = vector.load %arg11[%c0_25, %c0_26] : memref<8x32xbf16, #tpu.memory_space<vmem>>, vector<8x32xbf16>
      tpu.vector_store %arg11[%c0_25, %c0_26], %40 {strides = array<i32>} : memref<8x32xbf16, #tpu.memory_space<vmem>>, vector<8x32xbf16>,
    } else {
    }
    %c0 = arith.constant 0 : index
    %c0_1 = arith.constant 0 : index
    %3 = vector.load %arg11[%c0, %c0_1] : memref<8x32xbf16, #tpu.memory_space<vmem>>, vector<8x32xbf16>
    %c0_2 = arith.constant 0 : index
    %c0_3 = arith.constant 0 : index
    %4 = vector.load %arg8[%c0_2, %c0_3] : memref<32x128xbf16, #tpu.memory_space<vmem>>, vector<32x128xbf16>
    %cst = arith.constant dense<0.000000e+00> : vector<8x128xf32>
    %5 = tpu.matmul %3, %4, %cst {dimension_numbers = #tpu.dot_dimension_numbers<[1], [0], [0], [1], [0, 0, 1, 1], [], []>} : vector<8x32xbf16>, vector<32x128xbf16>, vector<8x128xf32> -> vector<8x128xf32>
    %c0_4 = arith.constant 0 : index
    %c0_5 = arith.constant 0 : index
    %6 = vector.load %arg9[%c0_4, %c0_5] : memref<1x128xf32, #tpu.memory_space<vmem>>, vector<1x128xf32>
    %7 = vector.broadcast %6 : vector<1x128xf32> to vector<8x128xf32>
    %8 = arith.addf %5, %7 : vector<8x128xf32>
    %c0_6 = arith.constant 0 : index
    %c0_7 = arith.constant 0 : index
    %9 = vector.load %arg10[%c0_6, %c0_7] : memref<8x128xf32, #tpu.memory_space<vmem>>, vector<8x128xf32>
    tpu.vector_store %arg10[%c0_6, %c0_7], %8 {strides = array<i32>} : memref<8x128xf32, #tpu.memory_space<vmem>>, vector<8x128xf32>,
    return
  }
  func.func @transform_0(%arg0: i32, %arg1: i32, %arg2: i32) -> (i32, i32) {
    %c0_i32 = arith.constant 0 : i32
    %c0_i32_0 = arith.constant 0 : i32
    return %arg0, %c0_i32 : i32, i32
  }
  func.func @transform_1(%arg0: i32, %arg1: i32, %arg2: i32) -> (i32, i32) {
    %c0_i32 = arith.constant 0 : i32
    %c0_i32_0 = arith.constant 0 : i32
    %c0_i32_1 = arith.constant 0 : i32
    return %c0_i32, %c0_i32_0 : i32, i32
  }
  func.func @transform_2(%arg0: i32, %arg1: i32, %arg2: i32) -> (i32, i32) {
    %c0_i32 = arith.constant 0 : i32
    %c0_i32_0 = arith.constant 0 : i32
    %c0_i32_1 = arith.constant 0 : i32
    return %c0_i32, %c0_i32_0 : i32, i32
  }
  func.func @transform_3(%arg0: i32, %arg1: i32, %arg2: i32) -> (i32, i32) {
    %c0_i32 = arith.constant 0 : i32
    %c0_i32_0 = arith.constant 0 : i32
    %c0_i32_1 = arith.constant 0 : i32
    return %c0_i32, %c0_i32_0 : i32, i32
  }
  func.func @transform_4(%arg0: i32, %arg1: i32, %arg2: i32) -> (i32, i32) {
    %c0_i32 = arith.constant 0 : i32
    %c0_i32_0 = arith.constant 0 : i32
    %c0_i32_1 = arith.constant 0 : i32
    return %c0_i32, %c0_i32_0 : i32, i32
  }
  func.func @transform_5(%arg0: i32, %arg1: i32, %arg2: i32) -> (i32, i32) {
    %c1_i32 = arith.constant 1 : i32
    %0 = arith.muli %arg1, %c1_i32 : i32
    %1 = arith.addi %0, %arg2 : i32
    %c0_i32 = arith.constant 0 : i32
    %c0_i32_0 = arith.constant 0 : i32
    return %c0_i32, %1 : i32, i32
  }
  func.func @transform_6(%arg0: i32, %arg1: i32, %arg2: i32) -> (i32, i32) {
    %c1_i32 = arith.constant 1 : i32
    %0 = arith.muli %arg1, %c1_i32 : i32
    %1 = arith.addi %0, %arg2 : i32
    %c0_i32 = arith.constant 0 : i32
    %c0_i32_0 = arith.constant 0 : i32
    return %c0_i32, %1 : i32, i32
  }
  func.func @transform_7(%arg0: i32, %arg1: i32, %arg2: i32) -> (i32, i32) {
    %c1_i32 = arith.constant 1 : i32
    %0 = arith.muli %arg1, %c1_i32 : i32
    %1 = arith.addi %0, %arg2 : i32
    %c0_i32 = arith.constant 0 : i32
    return %arg0, %1 : i32, i32
  }
}

</mosaic_0001>

<llo_original>
// kernel: masklm_forward.1
$region0: #{masklm_forward.1}
  #allocation0 [shape = 'u32[]', space=smem, size = 0x4, offset = 0x4, fixed_abs, tag = 'smem constant byte address 0x4 - core index']
  #allocation1 [shape = 'u32[144,128]{1,0:T(1,128)}', space=vmem, size = 0x12000, scoped, tag = 'internal scratch']
  #allocation2 [shape = 'bf16[8,32]{1,0:T(8,128)(2,1)}', space=vmem, size = 0x800, scoped, tag = 'scratch operand']
  %s0 = inlined_call_operand.vmem [shape: f32[8,32], index: 0, kind: input, shape index: {}]
  %s1 = inlined_call_operand.vmem [shape: f32[32,32], index: 1, kind: input, shape index: {}]
  %s2 = inlined_call_operand.vmem [shape: f32[1,32], index: 2, kind: input, shape index: {}]
  %s3 = inlined_call_operand.vmem [shape: f32[1,32], index: 3, kind: input, shape index: {}]
  %s4 = inlined_call_operand.vmem [shape: f32[1,32], index: 4, kind: input, shape index: {}]
  %s5 = inlined_call_operand.vmem [shape: bf16[32,128], index: 5, kind: input, shape index: {}]
  %s6 = inlined_call_operand.vmem [shape: f32[1,128], index: 6, kind: input, shape index: {}]
  %s7 = inlined_call_operand.hbm [shape: f32[8,128], index: 7, kind: output, shape index: {}]
  %s8 = sld [smem:[#allocation0]]
  $region42: #{masklm_forward.1} parent=0
    _
  %s10 = ssub.s32 1, %s8
  %s11 = scalar_select 0, %s10, %s8
  $region1: #{masklm_forward.1} parent=0
    #allocation3 [shape = 'u8[4096]{0}', space=vmem, size = 0x1000, scoped, tag = 'output window, operand 0, single buffered']
    #allocation4 [shape = 's32[1]{0}', space=sflag, size = 0x4, scoped, tag = 'scoped memory for masklm_forward.1']
    %12 = vsyncpa [#allocation4], 0
    // Predicated region
    $region2: #{masklm_forward.1} parent=1 // pred_check
      _
    $region3: #{masklm_forward.1} parent=1 // pred_check_branch
      %14 = sbr.rel (0) target = $region5
    $region4: #{masklm_forward.1} parent=1 // pred_region
      _
    $region5: #{masklm_forward.1} parent=1 // pred_fallthru
      _
    // Predicated region
    $region6: #{masklm_forward.1} parent=1 // pred_check
      _
    $region7: #{masklm_forward.1} parent=1 // pred_check_branch
      %16 = sbr.rel (0) target = $region9
    $region8: #{masklm_forward.1} parent=1 // pred_region
      _
    $region9: #{masklm_forward.1} parent=1 // pred_fallthru
      _
    // Predicated region
    $region10: #{masklm_forward.1} parent=1 // pred_check
      _
    $region11: #{masklm_forward.1} parent=1 // pred_check_branch
      %18 = sbr.rel (0) target = $region13
    $region12: #{masklm_forward.1} parent=1 // pred_region
      _
    $region13: #{masklm_forward.1} parent=1 // pred_fallthru
      _
    // Predicated region
    $region14: #{masklm_forward.1} parent=1 // pred_check
      _
    $region15: #{masklm_forward.1} parent=1 // pred_check_branch
      %20 = sbr.rel (0) target = $region17
    $region16: #{masklm_forward.1} parent=1 // pred_region
      _
    $region17: #{masklm_forward.1} parent=1 // pred_fallthru
      _
    // Predicated region
    $region18: #{masklm_forward.1} parent=1 // pred_check
      _
    $region19: #{masklm_forward.1} parent=1 // pred_check_branch
      %22 = sbr.rel (0) target = $region21
    $region20: #{masklm_forward.1} parent=1 // pred_region
      _
    $region21: #{masklm_forward.1} parent=1 // pred_fallthru
      _
    // Predicated region
    $region22: #{masklm_forward.1} parent=1 // pred_check
      _
    $region23: #{masklm_forward.1} parent=1 // pred_check_branch
      %24 = sbr.rel (0) target = $region25
    $region24: #{masklm_forward.1} parent=1 // pred_region
      %s25 = sadd.s32 0, 0
      %p26 = scmp.lt.s32.totalorder %s25, 0
      %s27 = scalar_select %p26, %s25, 0
      %s28 = smul.addr %s27, 4
      %s29 = scalar_lea.vmem %s5, %s28
      %s30 = sadd.s32 0, 0
    $region25: #{masklm_forward.1} parent=1 // pred_fallthru
      _
    // Predicated region
    $region26: #{masklm_forward.1} parent=1 // pred_check
      _
    $region27: #{masklm_forward.1} parent=1 // pred_check_branch
      %32 = sbr.rel (0) target = $region29
    $region28: #{masklm_forward.1} parent=1 // pred_region
      %s33 = sadd.s32 0, 0
      %p34 = scmp.lt.s32.totalorder %s33, 0
      %s35 = scalar_select %p34, %s33, 0
      %s36 = scalar_lea.vmem %s6, %s35
      %s37 = sadd.s32 0, 0
    $region29: #{masklm_forward.1} parent=1 // pred_fallthru
      _
    %s38 = sadd.s32 0, 0
    %p39 = scmp.lt.s32.totalorder %s38, 0
    %s40 = scalar_select %p39, %s38, 0
    %s41 = smul.addr %s40, 4
    %s42 = scalar_lea.vmem %s5, %s41
    %s43 = sadd.s32 0, 0
    %p44 = scmp.lt.s32.totalorder %s43, 0
    %s45 = scalar_select %p44, %s43, 0
    %s46 = scalar_lea.vmem %s6, %s45
    %s47 = sadd.s32 0, 0
    %p48 = scmp.lt.s32.totalorder %s47, 0
    %s49 = scalar_select %p48, %s47, 0
    %s50 = smul.addr %s49, 4
    %s51 = scalar_lea.vmem %s5, %s50
    %s52 = sadd.s32 0, 0
    %s53 = sadd.s32 0, 0
    %p54 = scmp.lt.s32.totalorder %s53, 0
    %s55 = scalar_select %p54, %s53, 0
    %s56 = scalar_lea.vmem %s6, %s55
    %s57 = sadd.s32 0, 0
    %s58 = sadd.s32 0, 0
    %p60 = scmp.eq.s32.totalorder 0, 0
    // Predicated region
    $region30: #{masklm_forward.1} parent=1 // pred_check
      %p61 = pneg %p60
    $region31: #{masklm_forward.1} parent=1 // pred_check_branch
      %63 = sbr.rel (%p61) target = $region33
    $region32: #{masklm_forward.1} parent=1 // pred_region
      %v64 = vld [vmem:[%s0] sm:$0xff]
      %v65 = vld [vmem:[%s1] sm:$0xff]
      %v66 = vld [vmem:[%s1 + $0x8] sm:$0xff]
      %v67 = vld [vmem:[%s1 + $0x10] sm:$0xff]
      %v68 = vld [vmem:[%s1 + $0x18] sm:$0xff]
      %v69 = vld [vmem:[%s2] sm:$0x1]
      %v71 = vlaneseq
      %v72 = vshrl.u32 %v71, 7
      %v73 = vsub.s32 0, %v72
      %v74 = vrot.slane %v69, %v73
      %vm76 = vcmask 261120
      %v78 = vsel %vm76, %v64, 0
      %80 = vmatprep.subr.mxu0 0.0
      %81 = vmatpush1.msra.mxu0 %v65
      %82 = vmatprep.subr.mxu0 0.0
      %83 = vmatpush1.msra.mxu0 %v66
      %84 = vmatprep.subr.mxu0 0.0
      %85 = vmatpush1.msra.mxu0 %v67
      %86 = vmatprep.subr.mxu0 0.0
      %87 = vmatpush1.msra.mxu0 %v68
      %88 = vmatprep.subr.mxu0 0.0
      %89 = vmatpush1.msra.mxu0 0.0
      %90 = vmatprep.subr.mxu0 0.0
      %91 = vmatpush1.msra.mxu0 0.0
      %92 = vmatprep.subr.mxu0 0.0
      %93 = vmatpush1.msra.mxu0 0.0
      %94 = vmatprep.subr.mxu0 0.0
      %95 = vmatpush1.msra.mxu0 0.0
      %96 = vmatprep.subr.mxu0 0.0
      %97 = vmatpush1.msra.mxu0 0.0
      %98 = vmatprep.subr.mxu0 0.0
      %99 = vmatpush1.msra.mxu0 0.0
      %100 = vmatprep.subr.mxu0 0.0
      %101 = vmatpush1.msra.mxu0 0.0
      %102 = vmatprep.subr.mxu0 0.0
      %103 = vmatpush1.msra.mxu0 0.0
      %104 = vmatprep.subr.mxu0 0.0
      %105 = vmatpush1.msra.mxu0 0.0
      %106 = vmatprep.subr.mxu0 0.0
      %107 = vmatpush1.msra.mxu0 0.0
      %108 = vmatprep.subr.mxu0 0.0
      %109 = vmatpush1.msra.mxu0 0.0
      %110 = vmatprep.subr.mxu0 0.0
      %111 = vmatpush1.msra.mxu0 0.0
      %112 = vmatprep.subr.mxu0 0.0
      %113 = vmatpush1.msra.mxu0 0.0
      %114 = vmatprep.subr.mxu0 0.0
      %115 = vmatpush1.msra.mxu0 0.0
      %116 = vmatprep.subr.mxu0 0.0
      %117 = vmatpush1.msra.mxu0 0.0
      %118 = vmatprep.subr.mxu0 0.0
      %119 = vmatpush1.msra.mxu0 0.0
      %120 = vmatprep.subr.mxu0 0.0
      %121 = vmatpush1.msra.mxu0 0.0
      %122 = vmatprep.subr.mxu0 0.0
      %123 = vmatpush1.msra.mxu0 0.0
      %124 = vmatprep.subr.mxu0 0.0
      %125 = vmatpush1.msra.mxu0 0.0
      %126 = vmatprep.subr.mxu0 0.0
      %127 = vmatpush1.msra.mxu0 0.0
      %128 = vmatprep.subr.mxu0 0.0
      %129 = vmatpush1.msra.mxu0 0.0
      %130 = vmatprep.subr.mxu0 0.0
      %131 = vmatpush1.msra.mxu0 0.0
      %132 = vmatprep.subr.mxu0 0.0
      %133 = vmatpush1.msra.mxu0 0.0
      %134 = vmatprep.subr.mxu0 0.0
      %135 = vmatpush1.msra.mxu0 0.0
      %136 = vmatprep.subr.mxu0 0.0
      %137 = vmatpush1.msra.mxu0 0.0
      %138 = vmatprep.subr.mxu0 0.0
      %139 = vmatpush1.msra.mxu0 0.0
      %140 = vmatprep.subr.mxu0 0.0
      %141 = vmatpush1.msra.mxu0 0.0
      %142 = vmatprep.subr.mxu0 0.0
      %143 = vmatpush1.msra.mxu0 0.0
      %144 = vmatprep.mubr.f32.mxu0 0.0
      %145 = vmatmul.mubr.f32.gmra.mrb[0].mxu0 %v78
      %v146 = vpop.f32.mrb[0].mxu0
      %v147 = vadd.f32 %v74, %v146
      %v148 = vpop.f32.mrb[0].mxu0
      %149 = vdwg.mxu0
      %v150 = vmax.f32 %v147, 0.0
      %v151 = vsel %vm76, %v150, 0.0
      %152 = vadd.xlane.f32.xlu0 %v151
      %v153 = vpop.xlane.xlu0 %152
      %v154 = vrcp.pop 32.0
      %v155 = vmul.f32 %v153, %v154
      %v156 = vsub.f32 %v150, %v155
      %v157 = vmul.f32 %v156, %v156
      %v158 = vsel %vm76, %v157, 0.0
      %159 = vadd.xlane.f32.xlu0 %v158
      %v160 = vpop.xlane.xlu0 %159
      %v161 = vmul.f32 %v160, %v154
      %v162 = vadd.f32 %v161, 1e-05
      %v163 = vrsqrt.pop %v162
      %v164 = vmul.f32 %v156, %v163
      %v165 = vld [vmem:[%s3] sm:$0x1]
      %v167 = vlaneseq
      %v168 = vshrl.u32 %v167, 7
      %v169 = vsub.s32 0, %v168
      %v170 = vrot.slane %v165, %v169
      %v172 = vmul.f32 %v164, %v170
      %v173 = vld [vmem:[%s4] sm:$0x1]
      %v175 = vlaneseq
      %v176 = vshrl.u32 %v175, 7
      %v177 = vsub.s32 0, %v176
      %v178 = vrot.slane %v173, %v177
      %v180 = vadd.f32 %v172, %v178
      %v181 = vpack.c.bf16 %v180, %v180
      %vm182 = vcmask 257024
      %183 = vst.msk [vmem:[#allocation2] sm:$0xf] %vm182, %v181
    $region33: #{masklm_forward.1} parent=1 // pred_fallthru
      _
    %v184 = vld [vmem:[#allocation2] sm:$0xf]
    %v185 = vld [vmem:[%s51] sm:$0xf]
    %v186 = vld [vmem:[%s51 + $0x4] sm:$0xf]
    %v187 = vld [vmem:[%s51 + $0x8] sm:$0xf]
    %v188 = vld [vmem:[%s51 + $0xc] sm:$0xf]
    %v189 = vld [vmem:[%s56] sm:$0x1]
    %v191 = vlaneseq
    %v192 = vshrl.u32 %v191, 7
    %v193 = vsub.s32 0, %v192
    %v194 = vrot.slane %v189, %v193
    %v200 = vunpack.c.l.b16 %v185
    %v201 = vunpack.c.l.b16 %v186
    %v202 = vunpack.c.l.b16 %v187
    %v203 = vunpack.c.l.b16 %v188
    %v204 = vpack.c.b16 %v201, %v200
    %v205 = vpack.c.b16 %v203, %v202
    %vm208 = vcmask 261120
    %v210 = vsel %vm208, %v184, 0
    %212 = vmatprep.subr.bf16.mxu0 0
    %213 = vmatpush1.bf16.msra.mxu0 %v204
    %214 = vmatprep.subr.bf16.mxu0 0
    %215 = vmatpush1.bf16.msra.mxu0 %v205
    %216 = vmatprep.subr.bf16.mxu0 0
    %217 = vmatpush1.bf16.msra.mxu0 0
    %218 = vmatprep.subr.bf16.mxu0 0
    %219 = vmatpush1.bf16.msra.mxu0 0
    %220 = vmatprep.subr.bf16.mxu0 0
    %221 = vmatpush1.bf16.msra.mxu0 0
    %222 = vmatprep.subr.bf16.mxu0 0
    %223 = vmatpush1.bf16.msra.mxu0 0
    %224 = vmatprep.subr.bf16.mxu0 0
    %225 = vmatpush1.bf16.msra.mxu0 0
    %226 = vmatprep.subr.bf16.mxu0 0
    %227 = vmatpush1.bf16.msra.mxu0 0
    %228 = vmatprep.subr.bf16.mxu0 0
    %229 = vmatpush1.bf16.msra.mxu0 0
    %230 = vmatprep.subr.bf16.mxu0 0
    %231 = vmatpush1.bf16.msra.mxu0 0
    %232 = vmatprep.subr.bf16.mxu0 0
    %233 = vmatpush1.bf16.msra.mxu0 0
    %234 = vmatprep.subr.bf16.mxu0 0
    %235 = vmatpush1.bf16.msra.mxu0 0
    %236 = vmatprep.subr.bf16.mxu0 0
    %237 = vmatpush1.bf16.msra.mxu0 0
    %238 = vmatprep.subr.bf16.mxu0 0
    %239 = vmatpush1.bf16.msra.mxu0 0
    %240 = vmatprep.subr.bf16.mxu0 0
    %241 = vmatpush1.bf16.msra.mxu0 0
    %242 = vmatprep.subr.bf16.mxu0 0
    %243 = vmatpush1.bf16.msra.mxu0 0
    %244 = vmatprep.mubr.bf16.mxu0 0
    %245 = vmatmul.mubr.bf16.gmra.mrb[0].mxu0 %v210
    %v246 = vpop.f32.mrb[0].mxu0
    %v247 = vadd.f32 %v194, %v246
    %v248 = vpop.f32.mrb[0].mxu0
    %v249 = vpop.f32.mrb[0].mxu0
    %v250 = vpop.f32.mrb[0].mxu0
    %251 = vdwg.mxu0
    %252 = vst [vmem:[#allocation3] sm:$0xff] %v247
    // Predicated region
    $region34: #{masklm_forward.1} parent=1 // pred_check
      _
    $region35: #{masklm_forward.1} parent=1 // pred_check_branch
      %254 = sbr.rel (0) target = $region37
    $region36: #{masklm_forward.1} parent=1 // pred_region
      %s255 = sadd.s32 0, 0
      %s257 = ssub.s32 128, 128
      %258 = vsyncadd [#allocation4], %s257
      %s259 = smul.addr %s255, 128
      %s260 = scalar_lea.hbm %s7, %s259
      %s262 = sshll.u32 [#allocation3], 4
      %s263 = int_to_ptr.vmem [resolvable:$true] %s262
      %265 = dma.vmem_to_hbm [thread:$0]  %s263, 128, %s260, [#allocation4]
    $region37: #{masklm_forward.1} parent=1 // pred_fallthru
      _
    // Predicated region
    $region38: #{masklm_forward.1} parent=1 // pred_check
      _
    $region39: #{masklm_forward.1} parent=1 // pred_check_branch
      %267 = sbr.rel (0) target = $region41
    $region40: #{masklm_forward.1} parent=1 // pred_region
      %268 = dma.done [#allocation4], 128
    $region41: #{masklm_forward.1} parent=1 // pred_fallthru
      _
    %269 = vsyncpa [#allocation4], 1

</llo_original>
